<compile_context>
chip_gen: v6e
topology: v6e:2x2x1
jax: 0.10.0
libtpu: 0.0.40
codegen_flags: <defaults>
</compile_context>

<pallas_src>
import functools

import jax
import jax.numpy as jnp
from jax import lax
from jax.experimental import pallas as pl
from jax.experimental.pallas import tpu as pltpu


def _round_up(n, m):
    return ((n + m - 1) // m) * m


def ppo_kernel(x_ref, w0_ref, w1_ref, w2_ref, w3_ref, b_ref, out_ref, *,
               hidden_d, n_actions):
    """Fused actor+critic MLP for one batch tile.

    x_ref : (TB, in_dim)
    w0    : (in_dim, 2H)          concat [actor_w0 | critic_w0]
    w1,w2 : (2H, 2H)              block-diag(actor_wi, critic_wi)
    w3    : (2H, A+1)             block-diag(actor_w3, critic_w3)
    b_ref : (4, max(2H, A+1))     packed (zero-padded) fused biases
    out   : (2, TB, A+1)          [0] = [logits | value], [1] = [probs | 0]
    """
    two_h = 2 * hidden_d
    a1 = n_actions + 1

    x = x_ref[...]
    h = jnp.dot(x, w0_ref[...], preferred_element_type=jnp.float32)
    h = jnp.maximum(h + b_ref[0:1, 0:two_h], 0.0)
    h = jnp.dot(h, w1_ref[...], preferred_element_type=jnp.float32)
    h = jnp.maximum(h + b_ref[1:2, 0:two_h], 0.0)
    h = jnp.dot(h, w2_ref[...], preferred_element_type=jnp.float32)
    h = jnp.maximum(h + b_ref[2:3, 0:two_h], 0.0)
    y = jnp.dot(h, w3_ref[...], preferred_element_type=jnp.float32)
    y = y + b_ref[3:4, 0:a1]                       # (TB, A+1) = [logits|value]

    # Softmax over the action columns only (value column masked out), kept at
    # full width A+1 so the store below is a full, unmasked block write.
    col = lax.broadcasted_iota(jnp.int32, y.shape, 1)
    is_action = col < n_actions
    masked = jnp.where(is_action, y, -1e30)        # value column -> ~ -inf
    m = jnp.max(masked, axis=-1, keepdims=True)
    e = jnp.exp(masked - m)                        # masked column -> 0.0
    probs = e * pl.reciprocal(jnp.sum(e, axis=-1, keepdims=True), approx=False)

    out_ref[0] = y
    out_ref[1] = probs


def _block_diag(a, c):
    za = jnp.zeros((a.shape[0], c.shape[1]), a.dtype)
    zc = jnp.zeros((c.shape[0], a.shape[1]), c.dtype)
    return jnp.concatenate(
        [jnp.concatenate([a, za], axis=1),
         jnp.concatenate([zc, c], axis=1)], axis=0)


@functools.partial(jax.jit, static_argnames=("n_actions", "hidden_d"))
def ppo_forward(x, params, n_actions, hidden_d, sample_key):
    """x: (B, C, H, W) float32. Returns (action, probs, value)."""
    B = x.shape[0]
    x_flat = x.reshape(B, -1).astype(jnp.float32)   # nn.Flatten (row-major)
    in_dim = x_flat.shape[1]
    H = hidden_d
    two_h = 2 * H
    a1 = n_actions + 1

    # ---- fuse actor & critic weights into block-diagonal slabs -------------
    w0 = jnp.concatenate([params["actor_w0"], params["critic_w0"]], axis=1)
    w1 = _block_diag(params["actor_w1"], params["critic_w1"])
    w2 = _block_diag(params["actor_w2"], params["critic_w2"])
    w3 = _block_diag(params["actor_w3"], params["critic_w3"])   # (2H, A+1)

    bw = max(two_h, a1)

    def _pack_bias(i):
        b = jnp.concatenate(
            [params[f"actor_b{i}"], params[f"critic_b{i}"]], axis=1)
        return jnp.pad(b, ((0, 0), (0, bw - b.shape[1])))

    biases = jnp.concatenate([_pack_bias(i) for i in range(4)], axis=0)  # (4,bw)

    # ---- batch tiling -------------------------------------------------------
    # Multiple of 8 (sublane), capped at 128 so the same tile fits every
    # generation's MXU / scoped-VMEM budget (v5e 16 MiB, v7x 32 MiB default).
    tile_b = min(128, _round_up(B, 8))
    b_pad = _round_up(B, tile_b)
    if b_pad != B:
        x_flat = jnp.pad(x_flat, ((0, b_pad - B), (0, 0)))

    out = pl.pallas_call(
        functools.partial(ppo_kernel, hidden_d=H, n_actions=n_actions),
        out_shape=jax.ShapeDtypeStruct((2, b_pad, a1), jnp.float32),
        grid=(b_pad // tile_b,),
        in_specs=[
            pl.BlockSpec((tile_b, in_dim), lambda i: (i, 0)),   # x: pipelined
            pl.BlockSpec((in_dim, two_h), lambda i: (0, 0)),    # weights stay
            pl.BlockSpec((two_h, two_h), lambda i: (0, 0)),     # VMEM-resident
            pl.BlockSpec((two_h, two_h), lambda i: (0, 0)),
            pl.BlockSpec((two_h, a1), lambda i: (0, 0)),
            pl.BlockSpec((4, bw), lambda i: (0, 0)),
        ],
        out_specs=pl.BlockSpec((2, tile_b, a1), lambda i: (0, i, 0)),
        compiler_params=pltpu.CompilerParams(
            dimension_semantics=("parallel",)),   # shards over v7x's 2 TCs
    )(x_flat, w0, w1, w2, w3, biases)

    y = out[0, :B]                       # [logits | value]
    logits = y[:, :n_actions]
    value = y[:, n_actions:]
    probs = out[1, :B, :n_actions]

    # Categorical(probs).sample() — uses the kernel's logits directly
    # (distributionally equivalent, no exp->log round trip).
    action = jax.random.categorical(sample_key, logits, axis=-1)
    return action, probs, value


def init_params(key, in_dim, hidden_d, n_actions):
    """Deterministic PyTorch-style init: U(-1/sqrt(fan_in), 1/sqrt(fan_in))."""
    dims_actor = [(in_dim, hidden_d), (hidden_d, hidden_d),
                  (hidden_d, hidden_d), (hidden_d, n_actions)]
    dims_critic = [(in_dim, hidden_d), (hidden_d, hidden_d),
                   (hidden_d, hidden_d), (hidden_d, 1)]
    params = {}
    for head, dims in (("actor", dims_actor), ("critic", dims_critic)):
        for i, (fin, fout) in enumerate(dims):
            key, kw, kb = jax.random.split(key, 3)
            bound = 1.0 / jnp.sqrt(float(fin))
            params[f"{head}_w{i}"] = jax.random.uniform(
                kw, (fin, fout), jnp.float32, -bound, bound)
            # biases kept 2-D (1, fout) so they pack/broadcast cleanly on TPU
            params[f"{head}_b{i}"] = jax.random.uniform(
                kb, (1, fout), jnp.float32, -bound, bound)
    return params


def _reference_forward(x, params, n_actions):
    """Pure-JAX reference of the PyTorch forward (probs, value)."""
    xf = x.reshape(x.shape[0], -1)
    hp = lax.Precision.HIGHEST

    def head(prefix):
        h = xf
        for i in range(3):
            h = jnp.maximum(
                jnp.dot(h, params[f"{prefix}_w{i}"], precision=hp)
                + params[f"{prefix}_b{i}"], 0.0)
        return jnp.dot(h, params[f"{prefix}_w3"], precision=hp) \
            + params[f"{prefix}_b3"]

    logits = head("actor")
    return jax.nn.softmax(logits, axis=-1), head("critic")


if __name__ == "__main__":
    B = 2
    in_shape = (4, 8, 8)          # (C, H, W)
    in_dim = 4 * 8 * 8            # 256
    hidden_d = 32
    n_actions = 6

    root = jax.random.PRNGKey(0)
    k_x, k_p, k_s = jax.random.split(root, 3)

    x = jax.random.normal(k_x, (B,) + in_shape, dtype=jnp.float32)
    params = init_params(k_p, in_dim, hidden_d, n_actions)

    action, probs, value = ppo_forward(x, params, n_actions, hidden_d, k_s)
    jax.block_until_ready((action, probs, value))

    assert action.shape == (B,)
    assert probs.shape == (B, n_actions)
    assert value.shape == (B, 1)
    assert bool(jnp.all((action >= 0) & (action < n_actions)))
    # softmax rows sum to 1
    assert bool(jnp.allclose(jnp.sum(probs, axis=-1), 1.0, atol=1e-5))

    # cross-check the fused kernel against the plain-JAX reference
    ref_probs, ref_value = _reference_forward(x, params, n_actions)
    assert bool(jnp.allclose(probs, ref_probs, atol=2e-2, rtol=2e-2))
    assert bool(jnp.allclose(value, ref_value, atol=2e-2, rtol=2e-2))

    print("KERNEL_OK")
</pallas_src>

<mosaic_0001>
module attributes {stable_mosaic.version = 11 : i64} {
  func.func @ppo_kernel(%arg0: i32, %arg1: memref<8x256xf32, #tpu.memory_space<vmem>>, %arg2: memref<256x64xf32, #tpu.memory_space<vmem>>, %arg3: memref<64x64xf32, #tpu.memory_space<vmem>>, %arg4: memref<64x64xf32, #tpu.memory_space<vmem>>, %arg5: memref<64x7xf32, #tpu.memory_space<vmem>>, %arg6: memref<4x64xf32, #tpu.memory_space<vmem>>, %arg7: memref<2x8x7xf32, #tpu.memory_space<vmem>>) attributes {dimension_semantics = [#tpu.dimension_semantics<parallel>], iteration_bounds = array<i64: 1>, scalar_prefetch = 0 : i64, scratch_operands = 0 : i64, tpu.core_type = #tpu.core_type<tc>, window_params = [{transform_indices = @transform_0, window_bounds = array<i64: 8, 256>}, {pipeline_mode = #tpu.pipeline_mode<synchronous>, transform_indices = @transform_1, window_bounds = array<i64: 256, 64>}, {pipeline_mode = #tpu.pipeline_mode<synchronous>, transform_indices = @transform_2, window_bounds = array<i64: 64, 64>}, {pipeline_mode = #tpu.pipeline_mode<synchronous>, transform_indices = @transform_3, window_bounds = array<i64: 64, 64>}, {pipeline_mode = #tpu.pipeline_mode<synchronous>, transform_indices = @transform_4, window_bounds = array<i64: 64, 7>}, {pipeline_mode = #tpu.pipeline_mode<synchronous>, transform_indices = @transform_5, window_bounds = array<i64: 4, 64>}, {transform_indices = @transform_6, window_bounds = array<i64: 2, 8, 7>}]} {
    %c0 = arith.constant 0 : index
    %c0_0 = arith.constant 0 : index
    %0 = vector.load %arg1[%c0, %c0_0] : memref<8x256xf32, #tpu.memory_space<vmem>>, vector<8x256xf32>
    %c0_1 = arith.constant 0 : index
    %c0_2 = arith.constant 0 : index
    %1 = vector.load %arg2[%c0_1, %c0_2] : memref<256x64xf32, #tpu.memory_space<vmem>>, vector<256x64xf32>
    %cst = arith.constant dense<0.000000e+00> : vector<8x64xf32>
    %2 = tpu.matmul %0, %1, %cst {dimension_numbers = #tpu.dot_dimension_numbers<[1], [0], [0], [1], [0, 0, 1, 1], [], []>} : vector<8x256xf32>, vector<256x64xf32>, vector<8x64xf32> -> vector<8x64xf32>
    %c0_3 = arith.constant 0 : index
    %c0_4 = arith.constant 0 : index
    %3 = vector.load %arg6[%c0_3, %c0_4] : memref<4x64xf32, #tpu.memory_space<vmem>>, vector<1x64xf32>
    %4 = vector.broadcast %3 : vector<1x64xf32> to vector<8x64xf32>
    %5 = arith.addf %2, %4 : vector<8x64xf32>
    %cst_5 = arith.constant 0.000000e+00 : f32
    %6 = vector.broadcast %cst_5 : f32 to vector<8x64xf32>
    %7 = arith.maximumf %5, %6 : vector<8x64xf32>
    %c0_6 = arith.constant 0 : index
    %c0_7 = arith.constant 0 : index
    %8 = vector.load %arg3[%c0_6, %c0_7] : memref<64x64xf32, #tpu.memory_space<vmem>>, vector<64x64xf32>
    %cst_8 = arith.constant dense<0.000000e+00> : vector<8x64xf32>
    %9 = tpu.matmul %7, %8, %cst_8 {dimension_numbers = #tpu.dot_dimension_numbers<[1], [0], [0], [1], [0, 0, 1, 1], [], []>} : vector<8x64xf32>, vector<64x64xf32>, vector<8x64xf32> -> vector<8x64xf32>
    %c1 = arith.constant 1 : index
    %c0_9 = arith.constant 0 : index
    %10 = vector.load %arg6[%c1, %c0_9] : memref<4x64xf32, #tpu.memory_space<vmem>>, vector<1x64xf32>
    %11 = vector.broadcast %10 : vector<1x64xf32> to vector<8x64xf32>
    %12 = arith.addf %9, %11 : vector<8x64xf32>
    %cst_10 = arith.constant 0.000000e+00 : f32
    %13 = vector.broadcast %cst_10 : f32 to vector<8x64xf32>
    %14 = arith.maximumf %12, %13 : vector<8x64xf32>
    %c0_11 = arith.constant 0 : index
    %c0_12 = arith.constant 0 : index
    %15 = vector.load %arg4[%c0_11, %c0_12] : memref<64x64xf32, #tpu.memory_space<vmem>>, vector<64x64xf32>
    %cst_13 = arith.constant dense<0.000000e+00> : vector<8x64xf32>
    %16 = tpu.matmul %14, %15, %cst_13 {dimension_numbers = #tpu.dot_dimension_numbers<[1], [0], [0], [1], [0, 0, 1, 1], [], []>} : vector<8x64xf32>, vector<64x64xf32>, vector<8x64xf32> -> vector<8x64xf32>
    %c2 = arith.constant 2 : index
    %c0_14 = arith.constant 0 : index
    %17 = vector.load %arg6[%c2, %c0_14] : memref<4x64xf32, #tpu.memory_space<vmem>>, vector<1x64xf32>
    %18 = vector.broadcast %17 : vector<1x64xf32> to vector<8x64xf32>
    %19 = arith.addf %16, %18 : vector<8x64xf32>
    %cst_15 = arith.constant 0.000000e+00 : f32
    %20 = vector.broadcast %cst_15 : f32 to vector<8x64xf32>
    %21 = arith.maximumf %19, %20 : vector<8x64xf32>
    %c0_16 = arith.constant 0 : index
    %c0_17 = arith.constant 0 : index
    %22 = vector.load %arg5[%c0_16, %c0_17] : memref<64x7xf32, #tpu.memory_space<vmem>>, vector<64x7xf32>
    %cst_18 = arith.constant dense<0.000000e+00> : vector<8x7xf32>
    %23 = tpu.matmul %21, %22, %cst_18 {dimension_numbers = #tpu.dot_dimension_numbers<[1], [0], [0], [1], [0, 0, 1, 1], [], []>} : vector<8x64xf32>, vector<64x7xf32>, vector<8x7xf32> -> vector<8x7xf32>
    %c3 = arith.constant 3 : index
    %c0_19 = arith.constant 0 : index
    %24 = vector.load %arg6[%c3, %c0_19] : memref<4x64xf32, #tpu.memory_space<vmem>>, vector<1x7xf32>
    %25 = vector.broadcast %24 : vector<1x7xf32> to vector<8x7xf32>
    %26 = arith.addf %23, %25 : vector<8x7xf32>
    %27 = tpu.iota {dimensions = array<i32: 1>} : vector<8x7xi32>
    %c6_i32 = arith.constant 6 : i32
    %28 = vector.broadcast %c6_i32 : i32 to vector<8x7xi32>
    %29 = arith.cmpi slt, %27, %28 : vector<8x7xi32>
    %cst_20 = arith.constant -1.000000e+30 : f32
    %30 = vector.broadcast %cst_20 : f32 to vector<8x7xf32>
    %31 = arith.select %29, %26, %30 : vector<8x7xi1>, vector<8x7xf32>
    %cst_21 = arith.constant dense<0xFF800000> : vector<8xf32>
    %32 = vector.multi_reduction <maximumf>, %31, %cst_21 [1] : vector<8x7xf32> to vector<8xf32>
    %33 = vector.shape_cast %32 : vector<8xf32> to vector<8x1xf32>
    %34 = vector.broadcast %33 : vector<8x1xf32> to vector<8x7xf32>
    %35 = arith.subf %31, %34 : vector<8x7xf32>
    %36 = math.exp %35 : vector<8x7xf32>
    %cst_22 = arith.constant dense<0.000000e+00> : vector<8xf32>
    %37 = vector.multi_reduction <add>, %36, %cst_22 [1] : vector<8x7xf32> to vector<8xf32>
    %38 = vector.shape_cast %37 : vector<8xf32> to vector<8x1xf32>
    %39 = tpu.reciprocal %38 : vector<8x1xf32> -> vector<8x1xf32>
    %40 = vector.broadcast %39 : vector<8x1xf32> to vector<8x7xf32>
    %41 = arith.mulf %36, %40 : vector<8x7xf32>
    %c0_23 = arith.constant 0 : index
    %c0_24 = arith.constant 0 : index
    %c0_25 = arith.constant 0 : index
    %42 = vector.load %arg7[%c0_23, %c0_24, %c0_25] : memref<2x8x7xf32, #tpu.memory_space<vmem>>, vector<1x8x7xf32>
    %43 = vector.shape_cast %42 : vector<1x8x7xf32> to vector<8x7xf32>
    %44 = vector.shape_cast %26 : vector<8x7xf32> to vector<1x8x7xf32>
    tpu.vector_store %arg7[%c0_23, %c0_24, %c0_25], %44 {strides = array<i32>} : memref<2x8x7xf32, #tpu.memory_space<vmem>>, vector<1x8x7xf32>,
    %c1_26 = arith.constant 1 : index
    %c0_27 = arith.constant 0 : index
    %c0_28 = arith.constant 0 : index
    %45 = vector.load %arg7[%c1_26, %c0_27, %c0_28] : memref<2x8x7xf32, #tpu.memory_space<vmem>>, vector<1x8x7xf32>
    %46 = vector.shape_cast %45 : vector<1x8x7xf32> to vector<8x7xf32>
    %47 = vector.shape_cast %41 : vector<8x7xf32> to vector<1x8x7xf32>
    tpu.vector_store %arg7[%c1_26, %c0_27, %c0_28], %47 {strides = array<i32>} : memref<2x8x7xf32, #tpu.memory_space<vmem>>, vector<1x8x7xf32>,
    return
  }
  func.func @transform_0(%arg0: i32) -> (i32, i32) {
    %c0_i32 = arith.constant 0 : i32
    %c0_i32_0 = arith.constant 0 : i32
    return %arg0, %c0_i32 : i32, i32
  }
  func.func @transform_1(%arg0: i32) -> (i32, i32) {
    %c0_i32 = arith.constant 0 : i32
    %c0_i32_0 = arith.constant 0 : i32
    %c0_i32_1 = arith.constant 0 : i32
    return %c0_i32, %c0_i32_0 : i32, i32
  }
  func.func @transform_2(%arg0: i32) -> (i32, i32) {
    %c0_i32 = arith.constant 0 : i32
    %c0_i32_0 = arith.constant 0 : i32
    %c0_i32_1 = arith.constant 0 : i32
    return %c0_i32, %c0_i32_0 : i32, i32
  }
  func.func @transform_3(%arg0: i32) -> (i32, i32) {
    %c0_i32 = arith.constant 0 : i32
    %c0_i32_0 = arith.constant 0 : i32
    %c0_i32_1 = arith.constant 0 : i32
    return %c0_i32, %c0_i32_0 : i32, i32
  }
  func.func @transform_4(%arg0: i32) -> (i32, i32) {
    %c0_i32 = arith.constant 0 : i32
    %c0_i32_0 = arith.constant 0 : i32
    %c0_i32_1 = arith.constant 0 : i32
    return %c0_i32, %c0_i32_0 : i32, i32
  }
  func.func @transform_5(%arg0: i32) -> (i32, i32) {
    %c0_i32 = arith.constant 0 : i32
    %c0_i32_0 = arith.constant 0 : i32
    %c0_i32_1 = arith.constant 0 : i32
    return %c0_i32, %c0_i32_0 : i32, i32
  }
  func.func @transform_6(%arg0: i32) -> (i32, i32, i32) {
    %c0_i32 = arith.constant 0 : i32
    %c0_i32_0 = arith.constant 0 : i32
    %c0_i32_1 = arith.constant 0 : i32
    return %c0_i32, %arg0, %c0_i32_0 : i32, i32, i32
  }
}

</mosaic_0001>

<llo_original>
// kernel: ppo_forward.1
$region0: #{ppo_forward.1}
  #allocation0 [shape = 'u32[]', space=smem, size = 0x4, offset = 0x4, fixed_abs, tag = 'smem constant byte address 0x4 - core index']
  #allocation1 [shape = 'u32[144,128]{1,0:T(1,128)}', space=vmem, size = 0x12000, scoped, tag = 'internal scratch']
  %s0 = inlined_call_operand.vmem [shape: f32[8,256], index: 0, kind: input, shape index: {}]
  %s1 = inlined_call_operand.vmem [shape: f32[256,64], index: 1, kind: input, shape index: {}]
  %s2 = inlined_call_operand.vmem [shape: f32[64,64], index: 2, kind: input, shape index: {}]
  %s3 = inlined_call_operand.vmem [shape: f32[64,64], index: 3, kind: input, shape index: {}]
  %s4 = inlined_call_operand.vmem [shape: f32[64,7], index: 4, kind: input, shape index: {}]
  %s5 = inlined_call_operand.vmem [shape: f32[4,64], index: 5, kind: input, shape index: {}]
  %s6 = inlined_call_operand.vmem [shape: f32[2,8,7], index: 6, kind: output, shape index: {}]
  %s7 = sld [smem:[#allocation0]]
  $region34: #{ppo_forward.1} parent=0
    _
  %s9 = ssub.s32 1, %s7
  %s10 = scalar_select 0, %s9, %s7
  // Predicated region
  $region2: #{ppo_forward.1} parent=0 // pred_check
    _
  $region3: #{ppo_forward.1} parent=0 // pred_check_branch
    %12 = sbr.rel (0) target = $region5
  $region4: #{ppo_forward.1} parent=0 // pred_region
    _
  $region5: #{ppo_forward.1} parent=0 // pred_fallthru
    _
  // Predicated region
  $region6: #{ppo_forward.1} parent=0 // pred_check
    _
  $region7: #{ppo_forward.1} parent=0 // pred_check_branch
    %14 = sbr.rel (0) target = $region9
  $region8: #{ppo_forward.1} parent=0 // pred_region
    _
  $region9: #{ppo_forward.1} parent=0 // pred_fallthru
    _
  // Predicated region
  $region10: #{ppo_forward.1} parent=0 // pred_check
    _
  $region11: #{ppo_forward.1} parent=0 // pred_check_branch
    %16 = sbr.rel (0) target = $region13
  $region12: #{ppo_forward.1} parent=0 // pred_region
    _
  $region13: #{ppo_forward.1} parent=0 // pred_fallthru
    _
  // Predicated region
  $region14: #{ppo_forward.1} parent=0 // pred_check
    _
  $region15: #{ppo_forward.1} parent=0 // pred_check_branch
    %18 = sbr.rel (0) target = $region17
  $region16: #{ppo_forward.1} parent=0 // pred_region
    _
  $region17: #{ppo_forward.1} parent=0 // pred_fallthru
    _
  // Predicated region
  $region18: #{ppo_forward.1} parent=0 // pred_check
    _
  $region19: #{ppo_forward.1} parent=0 // pred_check_branch
    %20 = sbr.rel (0) target = $region21
  $region20: #{ppo_forward.1} parent=0 // pred_region
    _
  $region21: #{ppo_forward.1} parent=0 // pred_fallthru
    _
  // Predicated region
  $region22: #{ppo_forward.1} parent=0 // pred_check
    _
  $region23: #{ppo_forward.1} parent=0 // pred_check_branch
    %22 = sbr.rel (0) target = $region25
  $region24: #{ppo_forward.1} parent=0 // pred_region
    _
  $region25: #{ppo_forward.1} parent=0 // pred_fallthru
    _
  %v23 = vld [vmem:[%s0] sm:$0xff]
  %v24 = vld [vmem:[%s0 + $0x8] sm:$0xff]
  %v25 = vld [vmem:[%s1] sm:$0xff]
  %v26 = vld [vmem:[%s1 + $0x8] sm:$0xff]
  %v27 = vld [vmem:[%s1 + $0x10] sm:$0xff]
  %v28 = vld [vmem:[%s1 + $0x18] sm:$0xff]
  %v29 = vld [vmem:[%s1 + $0x20] sm:$0xff]
  %v30 = vld [vmem:[%s1 + $0x28] sm:$0xff]
  %v31 = vld [vmem:[%s1 + $0x30] sm:$0xff]
  %v32 = vld [vmem:[%s1 + $0x38] sm:$0xff]
  %v33 = vld [vmem:[%s1 + $0x40] sm:$0xff]
  %v34 = vld [vmem:[%s1 + $0x48] sm:$0xff]
  %v35 = vld [vmem:[%s1 + $0x50] sm:$0xff]
  %v36 = vld [vmem:[%s1 + $0x58] sm:$0xff]
  %v37 = vld [vmem:[%s1 + $0x60] sm:$0xff]
  %v38 = vld [vmem:[%s1 + $0x68] sm:$0xff]
  %v39 = vld [vmem:[%s1 + $0x70] sm:$0xff]
  %v40 = vld [vmem:[%s1 + $0x78] sm:$0xff]
  %v41 = vld [vmem:[%s1 + $0x80] sm:$0xff]
  %v42 = vld [vmem:[%s1 + $0x88] sm:$0xff]
  %v43 = vld [vmem:[%s1 + $0x90] sm:$0xff]
  %v44 = vld [vmem:[%s1 + $0x98] sm:$0xff]
  %v45 = vld [vmem:[%s1 + $0xa0] sm:$0xff]
  %v46 = vld [vmem:[%s1 + $0xa8] sm:$0xff]
  %v47 = vld [vmem:[%s1 + $0xb0] sm:$0xff]
  %v48 = vld [vmem:[%s1 + $0xb8] sm:$0xff]
  %v49 = vld [vmem:[%s1 + $0xc0] sm:$0xff]
  %v50 = vld [vmem:[%s1 + $0xc8] sm:$0xff]
  %v51 = vld [vmem:[%s1 + $0xd0] sm:$0xff]
  %v52 = vld [vmem:[%s1 + $0xd8] sm:$0xff]
  %v53 = vld [vmem:[%s1 + $0xe0] sm:$0xff]
  %v54 = vld [vmem:[%s1 + $0xe8] sm:$0xff]
  %v55 = vld [vmem:[%s1 + $0xf0] sm:$0xff]
  %v56 = vld [vmem:[%s1 + $0xf8] sm:$0xff]
  %v57 = vld [vmem:[%s5] sm:$0x1]
  %v58 = vlaneseq
  %v59 = vshrl.u32 %v58, 7
  %v60 = vsub.s32 0, %v59
  %v61 = vrot.slane %v57, %v60
  %62 = vmatprep.subr.mxu0 0.0
  %63 = vmatpush1.msra.mxu0 %v40
  %64 = vmatprep.subr.mxu0 0.0
  %65 = vmatpush1.msra.mxu0 %v39
  %66 = vmatprep.subr.mxu0 0.0
  %67 = vmatpush1.msra.mxu0 %v38
  %68 = vmatprep.subr.mxu0 0.0
  %69 = vmatpush1.msra.mxu0 %v37
  %70 = vmatprep.subr.mxu0 0.0
  %71 = vmatpush1.msra.mxu0 %v36
  %72 = vmatprep.subr.mxu0 0.0
  %73 = vmatpush1.msra.mxu0 %v35
  %74 = vmatprep.subr.mxu0 0.0
  %75 = vmatpush1.msra.mxu0 %v34
  %76 = vmatprep.subr.mxu0 0.0
  %77 = vmatpush1.msra.mxu0 %v33
  %78 = vmatprep.subr.mxu0 0.0
  %79 = vmatpush1.msra.mxu0 %v32
  %80 = vmatprep.subr.mxu0 0.0
  %81 = vmatpush1.msra.mxu0 %v31
  %82 = vmatprep.subr.mxu0 0.0
  %83 = vmatpush1.msra.mxu0 %v30
  %84 = vmatprep.subr.mxu0 0.0
  %85 = vmatpush1.msra.mxu0 %v29
  %86 = vmatprep.subr.mxu0 0.0
  %87 = vmatpush1.msra.mxu0 %v28
  %88 = vmatprep.subr.mxu0 0.0
  %89 = vmatpush1.msra.mxu0 %v27
  %90 = vmatprep.subr.mxu0 0.0
  %91 = vmatpush1.msra.mxu0 %v26
  %92 = vmatprep.subr.mxu0 0.0
  %93 = vmatpush1.msra.mxu0 %v25
  %94 = vmatprep.subr.mxu0 0.0
  %95 = vmatpush2.msra.mxu0 %v56
  %96 = vmatprep.subr.mxu0 0.0
  %97 = vmatpush2.msra.mxu0 %v55
  %98 = vmatprep.subr.mxu0 0.0
  %99 = vmatpush2.msra.mxu0 %v54
  %100 = vmatprep.subr.mxu0 0.0
  %101 = vmatpush2.msra.mxu0 %v53
  %102 = vmatprep.subr.mxu0 0.0
  %103 = vmatpush2.msra.mxu0 %v52
  %104 = vmatprep.subr.mxu0 0.0
  %105 = vmatpush2.msra.mxu0 %v51
  %106 = vmatprep.subr.mxu0 0.0
  %107 = vmatpush2.msra.mxu0 %v50
  %108 = vmatprep.subr.mxu0 0.0
  %109 = vmatpush2.msra.mxu0 %v49
  %110 = vmatprep.subr.mxu0 0.0
  %111 = vmatpush2.msra.mxu0 %v48
  %112 = vmatprep.subr.mxu0 0.0
  %113 = vmatpush2.msra.mxu0 %v47
  %114 = vmatprep.subr.mxu0 0.0
  %115 = vmatpush2.msra.mxu0 %v46
  %116 = vmatprep.subr.mxu0 0.0
  %117 = vmatpush2.msra.mxu0 %v45
  %118 = vmatprep.subr.mxu0 0.0
  %119 = vmatpush2.msra.mxu0 %v44
  %120 = vmatprep.subr.mxu0 0.0
  %121 = vmatpush2.msra.mxu0 %v43
  %122 = vmatprep.subr.mxu0 0.0
  %123 = vmatpush2.msra.mxu0 %v42
  %124 = vmatprep.subr.mxu0 0.0
  %125 = vmatpush2.msra.mxu0 %v41
  %126 = vmatprep.mubr.f32.mxu0 %v24
  %127 = vmatmul.mubr.f32.gmra.mxu0 %v23
  %v128 = vpop.f32.mrf.mxu0
  %v129 = vadd.f32 %v61, %v128
  %v130 = vpop.f32.mrf.mxu0
  %131 = vdwg.mxu0
  %v132 = vmax.f32 %v129, 0.0
  %v133 = vld [vmem:[%s2] sm:$0xff]
  %v134 = vld [vmem:[%s2 + $0x8] sm:$0xff]
  %v135 = vld [vmem:[%s2 + $0x10] sm:$0xff]
  %v136 = vld [vmem:[%s2 + $0x18] sm:$0xff]
  %v137 = vld [vmem:[%s2 + $0x20] sm:$0xff]
  %v138 = vld [vmem:[%s2 + $0x28] sm:$0xff]
  %v139 = vld [vmem:[%s2 + $0x30] sm:$0xff]
  %v140 = vld [vmem:[%s2 + $0x38] sm:$0xff]
  %v141 = vld [vmem:[%s5 + $0x1] sm:$0x1]
  %v142 = vlaneseq
  %v143 = vshrl.u32 %v142, 7
  %v144 = vsub.s32 0, %v143
  %v145 = vrot.slane %v141, %v144
  %vm146 = vcmask 523264
  %v148 = vsel %vm146, %v132, 0
  %150 = vmatprep.subr.mxu0 0.0
  %151 = vmatpush1.msra.mxu0 0.0
  %152 = vmatprep.subr.mxu0 0.0
  %153 = vmatpush1.msra.mxu0 0.0
  %154 = vmatprep.subr.mxu0 0.0
  %155 = vmatpush1.msra.mxu0 0.0
  %156 = vmatprep.subr.mxu0 0.0
  %157 = vmatpush1.msra.mxu0 0.0
  %158 = vmatprep.subr.mxu0 0.0
  %159 = vmatpush1.msra.mxu0 0.0
  %160 = vmatprep.subr.mxu0 0.0
  %161 = vmatpush1.msra.mxu0 0.0
  %162 = vmatprep.subr.mxu0 0.0
  %163 = vmatpush1.msra.mxu0 0.0
  %164 = vmatprep.subr.mxu0 0.0
  %165 = vmatpush1.msra.mxu0 0.0
  %166 = vmatprep.subr.mxu0 0.0
  %167 = vmatpush1.msra.mxu0 %v140
  %168 = vmatprep.subr.mxu0 0.0
  %169 = vmatpush1.msra.mxu0 %v139
  %170 = vmatprep.subr.mxu0 0.0
  %171 = vmatpush1.msra.mxu0 %v138
  %172 = vmatprep.subr.mxu0 0.0
  %173 = vmatpush1.msra.mxu0 %v137
  %174 = vmatprep.subr.mxu0 0.0
  %175 = vmatpush1.msra.mxu0 %v136
  %176 = vmatprep.subr.mxu0 0.0
  %177 = vmatpush1.msra.mxu0 %v135
  %178 = vmatprep.subr.mxu0 0.0
  %179 = vmatpush1.msra.mxu0 %v134
  %180 = vmatprep.subr.mxu0 0.0
  %181 = vmatpush1.msra.mxu0 %v133
  %182 = vmatprep.subr.mxu0 0.0
  %183 = vmatpush2.msra.mxu0 0.0
  %184 = vmatprep.subr.mxu0 0.0
  %185 = vmatpush2.msra.mxu0 0.0
  %186 = vmatprep.subr.mxu0 0.0
  %187 = vmatpush2.msra.mxu0 0.0
  %188 = vmatprep.subr.mxu0 0.0
  %189 = vmatpush2.msra.mxu0 0.0
  %190 = vmatprep.subr.mxu0 0.0
  %191 = vmatpush2.msra.mxu0 0.0
  %192 = vmatprep.subr.mxu0 0.0
  %193 = vmatpush2.msra.mxu0 0.0
  %194 = vmatprep.subr.mxu0 0.0
  %195 = vmatpush2.msra.mxu0 0.0
  %196 = vmatprep.subr.mxu0 0.0
  %197 = vmatpush2.msra.mxu0 0.0
  %198 = vmatprep.subr.mxu0 0.0
  %199 = vmatpush2.msra.mxu0 0.0
  %200 = vmatprep.subr.mxu0 0.0
  %201 = vmatpush2.msra.mxu0 0.0
  %202 = vmatprep.subr.mxu0 0.0
  %203 = vmatpush2.msra.mxu0 0.0
  %204 = vmatprep.subr.mxu0 0.0
  %205 = vmatpush2.msra.mxu0 0.0
  %206 = vmatprep.subr.mxu0 0.0
  %207 = vmatpush2.msra.mxu0 0.0
  %208 = vmatprep.subr.mxu0 0.0
  %209 = vmatpush2.msra.mxu0 0.0
  %210 = vmatprep.subr.mxu0 0.0
  %211 = vmatpush2.msra.mxu0 0.0
  %212 = vmatprep.subr.mxu0 0.0
  %213 = vmatpush2.msra.mxu0 0.0
  %214 = vmatprep.mubr.f32.mxu0 0.0
  %215 = vmatmul.mubr.f32.gmra.mxu0 %v148
  %v216 = vpop.f32.mrf.mxu0
  %v217 = vadd.f32 %v145, %v216
  %v218 = vpop.f32.mrf.mxu0
  %219 = vdwg.mxu0
  %v220 = vmax.f32 %v217, 0.0
  %v221 = vld [vmem:[%s3] sm:$0xff]
  %v222 = vld [vmem:[%s3 + $0x8] sm:$0xff]
  %v223 = vld [vmem:[%s3 + $0x10] sm:$0xff]
  %v224 = vld [vmem:[%s3 + $0x18] sm:$0xff]
  %v225 = vld [vmem:[%s3 + $0x20] sm:$0xff]
  %v226 = vld [vmem:[%s3 + $0x28] sm:$0xff]
  %v227 = vld [vmem:[%s3 + $0x30] sm:$0xff]
  %v228 = vld [vmem:[%s3 + $0x38] sm:$0xff]
  %v229 = vld [vmem:[%s5 + $0x2] sm:$0x1]
  %v230 = vlaneseq
  %v231 = vshrl.u32 %v230, 7
  %v232 = vsub.s32 0, %v231
  %v233 = vrot.slane %v229, %v232
  %v235 = vsel %vm146, %v220, 0
  %237 = vmatprep.subr.mxu0 0.0
  %238 = vmatpush1.msra.mxu0 0.0
  %239 = vmatprep.subr.mxu0 0.0
  %240 = vmatpush1.msra.mxu0 0.0
  %241 = vmatprep.subr.mxu0 0.0
  %242 = vmatpush1.msra.mxu0 0.0
  %243 = vmatprep.subr.mxu0 0.0
  %244 = vmatpush1.msra.mxu0 0.0
  %245 = vmatprep.subr.mxu0 0.0
  %246 = vmatpush1.msra.mxu0 0.0
  %247 = vmatprep.subr.mxu0 0.0
  %248 = vmatpush1.msra.mxu0 0.0
  %249 = vmatprep.subr.mxu0 0.0
  %250 = vmatpush1.msra.mxu0 0.0
  %251 = vmatprep.subr.mxu0 0.0
  %252 = vmatpush1.msra.mxu0 0.0
  %253 = vmatprep.subr.mxu0 0.0
  %254 = vmatpush1.msra.mxu0 %v228
  %255 = vmatprep.subr.mxu0 0.0
  %256 = vmatpush1.msra.mxu0 %v227
  %257 = vmatprep.subr.mxu0 0.0
  %258 = vmatpush1.msra.mxu0 %v226
  %259 = vmatprep.subr.mxu0 0.0
  %260 = vmatpush1.msra.mxu0 %v225
  %261 = vmatprep.subr.mxu0 0.0
  %262 = vmatpush1.msra.mxu0 %v224
  %263 = vmatprep.subr.mxu0 0.0
  %264 = vmatpush1.msra.mxu0 %v223
  %265 = vmatprep.subr.mxu0 0.0
  %266 = vmatpush1.msra.mxu0 %v222
  %267 = vmatprep.subr.mxu0 0.0
  %268 = vmatpush1.msra.mxu0 %v221
  %269 = vmatprep.subr.mxu0 0.0
  %270 = vmatpush2.msra.mxu0 0.0
  %271 = vmatprep.subr.mxu0 0.0
  %272 = vmatpush2.msra.mxu0 0.0
  %273 = vmatprep.subr.mxu0 0.0
  %274 = vmatpush2.msra.mxu0 0.0
  %275 = vmatprep.subr.mxu0 0.0
  %276 = vmatpush2.msra.mxu0 0.0
  %277 = vmatprep.subr.mxu0 0.0
  %278 = vmatpush2.msra.mxu0 0.0
  %279 = vmatprep.subr.mxu0 0.0
  %280 = vmatpush2.msra.mxu0 0.0
  %281 = vmatprep.subr.mxu0 0.0
  %282 = vmatpush2.msra.mxu0 0.0
  %283 = vmatprep.subr.mxu0 0.0
  %284 = vmatpush2.msra.mxu0 0.0
  %285 = vmatprep.subr.mxu0 0.0
  %286 = vmatpush2.msra.mxu0 0.0
  %287 = vmatprep.subr.mxu0 0.0
  %288 = vmatpush2.msra.mxu0 0.0
  %289 = vmatprep.subr.mxu0 0.0
  %290 = vmatpush2.msra.mxu0 0.0
  %291 = vmatprep.subr.mxu0 0.0
  %292 = vmatpush2.msra.mxu0 0.0
  %293 = vmatprep.subr.mxu0 0.0
  %294 = vmatpush2.msra.mxu0 0.0
  %295 = vmatprep.subr.mxu0 0.0
  %296 = vmatpush2.msra.mxu0 0.0
  %297 = vmatprep.subr.mxu0 0.0
  %298 = vmatpush2.msra.mxu0 0.0
  %299 = vmatprep.subr.mxu0 0.0
  %300 = vmatpush2.msra.mxu0 0.0
  %301 = vmatprep.mubr.f32.mxu0 0.0
  %302 = vmatmul.mubr.f32.gmra.mxu0 %v235
  %v303 = vpop.f32.mrf.mxu0
  %v304 = vadd.f32 %v233, %v303
  %v305 = vpop.f32.mrf.mxu0
  %306 = vdwg.mxu0
  %v307 = vmax.f32 %v304, 0.0
  %v308 = vld [vmem:[%s4] sm:$0xff]
  %v309 = vld [vmem:[%s4 + $0x8] sm:$0xff]
  %v310 = vld [vmem:[%s4 + $0x10] sm:$0xff]
  %v311 = vld [vmem:[%s4 + $0x18] sm:$0xff]
  %v312 = vld [vmem:[%s4 + $0x20] sm:$0xff]
  %v313 = vld [vmem:[%s4 + $0x28] sm:$0xff]
  %v314 = vld [vmem:[%s4 + $0x30] sm:$0xff]
  %v315 = vld [vmem:[%s4 + $0x38] sm:$0xff]
  %v316 = vld [vmem:[%s5 + $0x3] sm:$0x1]
  %v317 = vlaneseq
  %v318 = vshrl.u32 %v317, 7
  %v319 = vsub.s32 0, %v318
  %v320 = vrot.slane %v316, %v319
  %v322 = vsel %vm146, %v307, 0
  %324 = vmatprep.subr.mxu0 0.0
  %325 = vmatpush1.msra.mxu0 0.0
  %326 = vmatprep.subr.mxu0 0.0
  %327 = vmatpush1.msra.mxu0 0.0
  %328 = vmatprep.subr.mxu0 0.0
  %329 = vmatpush1.msra.mxu0 0.0
  %330 = vmatprep.subr.mxu0 0.0
  %331 = vmatpush1.msra.mxu0 0.0
  %332 = vmatprep.subr.mxu0 0.0
  %333 = vmatpush1.msra.mxu0 0.0
  %334 = vmatprep.subr.mxu0 0.0
  %335 = vmatpush1.msra.mxu0 0.0
  %336 = vmatprep.subr.mxu0 0.0
  %337 = vmatpush1.msra.mxu0 0.0
  %338 = vmatprep.subr.mxu0 0.0
  %339 = vmatpush1.msra.mxu0 0.0
  %340 = vmatprep.subr.mxu0 0.0
  %341 = vmatpush1.msra.mxu0 %v315
  %342 = vmatprep.subr.mxu0 0.0
  %343 = vmatpush1.msra.mxu0 %v314
  %344 = vmatprep.subr.mxu0 0.0
  %345 = vmatpush1.msra.mxu0 %v313
  %346 = vmatprep.subr.mxu0 0.0
  %347 = vmatpush1.msra.mxu0 %v312
  %348 = vmatprep.subr.mxu0 0.0
  %349 = vmatpush1.msra.mxu0 %v311
  %350 = vmatprep.subr.mxu0 0.0
  %351 = vmatpush1.msra.mxu0 %v310
  %352 = vmatprep.subr.mxu0 0.0
  %353 = vmatpush1.msra.mxu0 %v309
  %354 = vmatprep.subr.mxu0 0.0
  %355 = vmatpush1.msra.mxu0 %v308
  %356 = vmatprep.subr.mxu0 0.0
  %357 = vmatpush2.msra.mxu0 0.0
  %358 = vmatprep.subr.mxu0 0.0
  %359 = vmatpush2.msra.mxu0 0.0
  %360 = vmatprep.subr.mxu0 0.0
  %361 = vmatpush2.msra.mxu0 0.0
  %362 = vmatprep.subr.mxu0 0.0
  %363 = vmatpush2.msra.mxu0 0.0
  %364 = vmatprep.subr.mxu0 0.0
  %365 = vmatpush2.msra.mxu0 0.0
  %366 = vmatprep.subr.mxu0 0.0
  %367 = vmatpush2.msra.mxu0 0.0
  %368 = vmatprep.subr.mxu0 0.0
  %369 = vmatpush2.msra.mxu0 0.0
  %370 = vmatprep.subr.mxu0 0.0
  %371 = vmatpush2.msra.mxu0 0.0
  %372 = vmatprep.subr.mxu0 0.0
  %373 = vmatpush2.msra.mxu0 0.0
  %374 = vmatprep.subr.mxu0 0.0
  %375 = vmatpush2.msra.mxu0 0.0
  %376 = vmatprep.subr.mxu0 0.0
  %377 = vmatpush2.msra.mxu0 0.0
  %378 = vmatprep.subr.mxu0 0.0
  %379 = vmatpush2.msra.mxu0 0.0
  %380 = vmatprep.subr.mxu0 0.0
  %381 = vmatpush2.msra.mxu0 0.0
  %382 = vmatprep.subr.mxu0 0.0
  %383 = vmatpush2.msra.mxu0 0.0
  %384 = vmatprep.subr.mxu0 0.0
  %385 = vmatpush2.msra.mxu0 0.0
  %386 = vmatprep.subr.mxu0 0.0
  %387 = vmatpush2.msra.mxu0 0.0
  %388 = vmatprep.mubr.f32.mxu0 0.0
  %389 = vmatmul.mubr.f32.gmra.mxu0 %v322
  %v390 = vpop.f32.mrf.mxu0
  %v391 = vadd.f32 %v320, %v390
  %v392 = vpop.f32.mrf.mxu0
  %393 = vdwg.mxu0
  %v394 = vlaneseq
  %v395 = vand.u32 %v394, 127
  %vm396 = vcmp.lt.s32.totalorder %v395, 6
  %v397 = vsel %vm396, %v391, -1e+30
  %vm398 = vcmask 56320
  %v399 = vsel %vm398, %v397, -inf
  %400 = vmax.xlane.f32.xlu0 %v399
  %v401 = vpop.xlane.xlu0 %400
  %v402 = vsub.f32 %v397, %v401
  %v403 = vmul.f32 %v402, 1.442695
  %v404 = vpow.pop %v403
  %v405 = vsel %vm398, %v404, 0.0
  %406 = vadd.xlane.f32.xlu0 %v405
  %v407 = vpop.xlane.xlu0 %406
  %v408 = vrcp.pop %v407
  %v409 = vmul.f32 %v404, %v408
  %410 = vst.msk [vmem:[%s6] sm:$0xff] %vm398, %v391
  %s411 = scalar_lea.vmem %s6, 8
  %412 = vst.msk [vmem:[%s411] sm:$0xff] %vm398, %v409
  // Predicated region
  $region26: #{ppo_forward.1} parent=0 // pred_check
    _
  $region27: #{ppo_forward.1} parent=0 // pred_check_branch
    %414 = sbr.rel (0) target = $region29
  $region28: #{ppo_forward.1} parent=0 // pred_region
    _
  $region29: #{ppo_forward.1} parent=0 // pred_fallthru
    _
  // Predicated region
  $region30: #{ppo_forward.1} parent=0 // pred_check
    _
  $region31: #{ppo_forward.1} parent=0 // pred_check_branch
    %416 = sbr.rel (0) target = $region33
  $region32: #{ppo_forward.1} parent=0 // pred_region
    _
  $region33: #{ppo_forward.1} parent=0 // pred_fallthru
    _

</llo_original>
